<compile_context>
chip_gen: v6e
topology: v6e:2x2x1
jax: 0.10.0
libtpu: 0.0.40
codegen_flags: <defaults>
</compile_context>

<pallas_src>
import functools

import jax
import jax.numpy as jnp
from jax.experimental import pallas as pl
from jax.experimental.pallas import tpu as pltpu


# ---------------------------------------------------------------------------
# Pass 1: tiled global-average-pool reduction; per-ci partial 1x1-conv matmul
#         at the final HW step (BN + ReLU happen in Pass 2).
# ---------------------------------------------------------------------------
def _pool_reduce_kernel(x_ref, wt_ref, part_ref, acc_ref, *,
                        hw_total, hw_tile, mask_hw,
                        c_in_total, cin_tile, mask_ci):
    ci = pl.program_id(0)
    k = pl.program_id(1)
    n_k = pl.num_programs(1)

    @pl.when(k == 0)
    def _init():
        acc_ref[...] = jnp.zeros_like(acc_ref)

    def _accum(masked):
        # Per-tile f32 cast keeps the live VMEM footprint to one block.
        x = x_ref[...].astype(jnp.float32)                 # (N, cin_tile, hw_tile)
        if masked:
            pos = jax.lax.broadcasted_iota(jnp.int32, x.shape, 2) + k * hw_tile
            x = jnp.where(pos < hw_total, x, 0.0)
        acc_ref[...] += jnp.sum(x, axis=-1)                # (N, cin_tile)

    if mask_hw:
        # Gate the tail mask to the last HW tile only: the steady-state loop is
        # a pure load + add (DMA-bound), no iota/compare/select per tile.
        @pl.when(k < n_k - 1)
        def _body():
            _accum(False)

        @pl.when(k == n_k - 1)
        def _tail():
            _accum(True)
    else:
        _accum(False)

    @pl.when(k == n_k - 1)
    def _finalize():
        pooled = acc_ref[...] * (1.0 / float(hw_total))    # (N, cin_tile)
        if mask_ci:
            # Zero channels past C_in (last ci tile reads past the array; the
            # padded weight rows are zero too, but mask defensively vs garbage).
            ch = jax.lax.broadcasted_iota(jnp.int32, pooled.shape, 1) + ci * cin_tile
            pooled = jnp.where(ch < c_in_total, pooled, 0.0)
        part_ref[0] = jnp.dot(pooled, wt_ref[0],
                              preferred_element_type=jnp.float32)


# ---------------------------------------------------------------------------
# Pass 2: sum per-ci partials + folded BatchNorm + ReLU (tiny, hidden under the
#         store), then interpolate(1x1 -> HxW) == lane-dense spatial broadcast.
# ---------------------------------------------------------------------------
def _bcast_bn_relu_kernel(part_ref, scale_ref, bias_ref, o_ref):
    y = jnp.sum(part_ref[...], axis=0)                     # (N, C_out) f32
    y = jnp.maximum(y * scale_ref[...] + bias_ref[...], 0.0)
    o_ref[...] = jnp.broadcast_to(y[:, :, None], o_ref.shape).astype(o_ref.dtype)


# ---------------------------------------------------------------------------
# Tile / budget selection.
# ---------------------------------------------------------------------------
def _vmem_budgets():
    """(per x-block budget bytes, scoped vmem_limit_bytes), generation-aware."""
    mib = 1024 * 1024
    try:
        cap = getattr(pltpu.get_tpu_info(), "vmem_capacity_bytes", None)
    except Exception:  # pragma: no cover - be robust if query is unavailable
        cap = None
    if cap is not None and cap >= 100 * mib:   # v5e / v6e: 128 MiB physical VMEM
        return 12 * mib, 64 * mib
    return 8 * mib, 48 * mib                   # v7x (64 MiB) or unknown


def _hw_tile_for(rows, hw, itemsize, budget_bytes):
    """Largest multiple-of-128 HW tile whose single buffer fits the budget."""
    if hw <= 128:
        return hw                              # full-extent trailing dim allowed
    cap = budget_bytes // max(rows * itemsize, 1)
    cap = (min(cap, hw) // 128) * 128
    return max(128, cap)


def _pick_cin_tile(c_in, sub):
    if c_in <= 512:
        return c_in                            # full extent (always allowed)
    # Prefer the largest exact divisor in [256, 512] (sublane-aligned) ...
    for t in range(512, 255, -sub):
        if c_in % t == 0:
            return t
    # ... else a large aligned tile with a masked C_in tail (512 % {8,16,32}==0).
    return 512


def _choose_tiles(n, c_in, hw, itemsize, sub, budget):
    cin_tile = _pick_cin_tile(c_in, sub)
    hw_tile = _hw_tile_for(n * cin_tile, hw, itemsize, budget)
    # Co-optimize: keep the lane (HW) dimension >= 512 for streaming efficiency;
    # shrink the C_in tile (masked tail allowed) rather than collapsing hw_tile.
    while hw >= 512 and hw_tile < 512 and cin_tile > sub:
        cin_tile = max(sub, (cin_tile // 2) // sub * sub)
        hw_tile = _hw_tile_for(n * cin_tile, hw, itemsize, budget)
    return cin_tile, hw_tile


def _valid_hw_tile(t, hw):
    if hw <= 128:
        return hw
    t = max(128, min(int(t), hw))
    return (t // 128) * 128


def _valid_cin_tile(t, c_in, sub):
    t = max(1, min(int(t), c_in))
    if t >= c_in:
        return c_in
    if t < sub:
        return min(sub, c_in)
    return (t // sub) * sub


# ---------------------------------------------------------------------------
# Wrapper.
# ---------------------------------------------------------------------------
def aspp_pooling(x, conv_w, bn_gamma, bn_beta, bn_mean, bn_var, eps=1e-5,
                 *, hw_tile=None, cin_tile=None):
    """AsppPooling forward (inference-mode BN).  x: (N, C_in, H, W) NCHW."""
    n, c_in, h, w = x.shape
    c_out = conv_w.shape[0]
    hw = h * w
    itemsize = jnp.dtype(x.dtype).itemsize
    # Dtype-aware sublane multiple: 8 for 32-bit, 16 for bf16, 32 for int8/fp8.
    sub = {1: 32, 2: 16}.get(itemsize, 8)

    x_budget, vmem_limit = _vmem_budgets()

    if cin_tile is not None:
        cin_tile = _valid_cin_tile(cin_tile, c_in, sub)
        hw_tile1 = (_valid_hw_tile(hw_tile, hw) if hw_tile is not None
                    else _hw_tile_for(n * cin_tile, hw, itemsize, x_budget))
    elif hw_tile is not None:
        cin_tile = _pick_cin_tile(c_in, sub)
        hw_tile1 = _valid_hw_tile(hw_tile, hw)
    else:
        cin_tile, hw_tile1 = _choose_tiles(n, c_in, hw, itemsize, sub, x_budget)

    hw_tile2 = (_valid_hw_tile(hw_tile, hw) if hw_tile is not None
                else _hw_tile_for(n * c_out, hw, itemsize, x_budget))

    n_ci = pl.cdiv(c_in, cin_tile)
    n_hw1 = pl.cdiv(hw, hw_tile1)
    n_hw2 = pl.cdiv(hw, hw_tile2)
    mask_hw = (hw % hw_tile1) != 0
    mask_ci = (c_in % cin_tile) != 0

    x_flat = x.reshape(n, c_in, hw)

    # 1x1 conv weight pre-transposed to (C_in, C_out), zero-padded to the C_in
    # tile grid and blocked in the wrapper (static) -> no in-kernel transpose,
    # and only one (cin_tile, C_out) block resident per ci step.
    wt = jnp.transpose(conv_w.reshape(c_out, c_in)).astype(jnp.float32)
    pad = n_ci * cin_tile - c_in
    if pad:
        wt = jnp.pad(wt, ((0, pad), (0, 0)))
    wt = wt.reshape(n_ci, cin_tile, c_out)

    # Fold inference-mode BatchNorm into a per-channel affine.
    # TODO(synk): training-mode BatchNorm (batch statistics over N at 1x1) not
    #             modeled; inference-mode running stats are used instead.
    scale = bn_gamma.astype(jnp.float32) / jnp.sqrt(bn_var.astype(jnp.float32) + eps)
    bias = bn_beta.astype(jnp.float32) - bn_mean.astype(jnp.float32) * scale
    scale2d = scale.reshape(1, c_out)
    bias2d = bias.reshape(1, c_out)

    kernel1 = functools.partial(
        _pool_reduce_kernel, hw_total=hw, hw_tile=hw_tile1, mask_hw=mask_hw,
        c_in_total=c_in, cin_tile=cin_tile, mask_ci=mask_ci)

    cost1 = pl.CostEstimate(
        flops=n * c_in * hw + 2 * n * c_in * c_out,
        transcendentals=0,
        bytes_accessed=n * c_in * hw * itemsize
                       + 4 * (n_ci * cin_tile * c_out + n_ci * n * c_out))

    partials = pl.pallas_call(
        kernel1,
        out_shape=jax.ShapeDtypeStruct((n_ci, n, c_out), jnp.float32),
        grid_spec=pltpu.PrefetchScalarGridSpec(
            num_scalar_prefetch=0,
            grid=(n_ci, n_hw1),
            in_specs=[
                pl.BlockSpec((n, cin_tile, hw_tile1), lambda ci, k: (0, ci, k)),
                pl.BlockSpec((1, cin_tile, c_out), lambda ci, k: (ci, 0, 0)),
            ],
            out_specs=pl.BlockSpec((1, n, c_out), lambda ci, k: (ci, 0, 0)),
            scratch_shapes=[pltpu.VMEM((n, cin_tile), jnp.float32)],
        ),
        compiler_params=pltpu.CompilerParams(
            dimension_semantics=("parallel", "arbitrary"),
            vmem_limit_bytes=vmem_limit),
        cost_estimate=cost1,
    )(x_flat, wt)

    cost2 = pl.CostEstimate(
        flops=n_hw2 * (n_ci + 3) * n * c_out,
        transcendentals=0,
        bytes_accessed=n * c_out * hw * itemsize
                       + 4 * (n_ci * n * c_out + 2 * c_out))

    out_flat = pl.pallas_call(
        _bcast_bn_relu_kernel,
        out_shape=jax.ShapeDtypeStruct((n, c_out, hw), x.dtype),
        grid_spec=pltpu.PrefetchScalarGridSpec(
            num_scalar_prefetch=0,
            grid=(n_hw2,),
            in_specs=[
                pl.BlockSpec((n_ci, n, c_out), lambda k: (0, 0, 0)),
                pl.BlockSpec((1, c_out), lambda k: (0, 0)),
                pl.BlockSpec((1, c_out), lambda k: (0, 0)),
            ],
            out_specs=pl.BlockSpec((n, c_out, hw_tile2), lambda k: (0, 0, k)),
        ),
        compiler_params=pltpu.CompilerParams(
            dimension_semantics=("parallel",),
            vmem_limit_bytes=vmem_limit),
        cost_estimate=cost2,
    )(partials, scale2d, bias2d)

    return out_flat.reshape(n, c_out, h, w)


def _reference(x, conv_w, bn_gamma, bn_beta, bn_mean, bn_var, eps=1e-5):
    n, c_in, h, w = x.shape
    c_out = conv_w.shape[0]
    pooled = jnp.mean(x.astype(jnp.float32), axis=(2, 3))           # (N, C_in)
    y = pooled @ conv_w.reshape(c_out, c_in).astype(jnp.float32).T  # (N, C_out)
    scale = bn_gamma / jnp.sqrt(bn_var + eps)
    y = y * scale + (bn_beta - bn_mean * scale)
    y = jnp.maximum(y, 0.0)
    return jnp.broadcast_to(y[:, :, None, None], (n, c_out, h, w)).astype(x.dtype)


if __name__ == "__main__":
    key = jax.random.PRNGKey(0)

    def make_case(k, n, c_in, c_out, h, w):
        k_x, k_w, k_g, k_b = jax.random.split(k, 4)
        x = jax.random.normal(k_x, (n, c_in, h, w), dtype=jnp.float32)
        conv_w = jax.random.normal(k_w, (c_out, c_in, 1, 1), dtype=jnp.float32) * 0.1
        bn_gamma = 1.0 + 0.1 * jax.random.normal(k_g, (c_out,), dtype=jnp.float32)
        bn_beta = 0.1 * jax.random.normal(k_b, (c_out,), dtype=jnp.float32)
        bn_mean = 0.05 * jnp.arange(c_out, dtype=jnp.float32)
        bn_var = 1.0 + 0.01 * jnp.arange(c_out, dtype=jnp.float32)
        return x, conv_w, bn_gamma, bn_beta, bn_mean, bn_var

    k1, k2, k3 = jax.random.split(key, 3)

    # Case 1: module-sized small shape; hw_tile=128 forces a 2-step HW reduction
    # grid so the accumulate/finalize path is exercised.
    args1 = make_case(k1, 2, 4, 4, 16, 16)
    out1 = jax.block_until_ready(aspp_pooling(*args1, hw_tile=128))
    ref1 = _reference(*args1)
    assert out1.shape == ref1.shape
    assert jnp.allclose(out1, ref1, atol=1e-5, rtol=1e-5)

    # Case 2: HW=225 (not a multiple of 128 -> gated masked partial tile,
    # clipped output writeback) and two C_in tiles (parallel ci axis).
    args2 = make_case(k2, 2, 16, 8, 15, 15)
    out2 = jax.block_until_ready(aspp_pooling(*args2, hw_tile=128, cin_tile=8))
    ref2 = _reference(*args2)
    assert out2.shape == ref2.shape
    assert jnp.allclose(out2, ref2, atol=1e-5, rtol=1e-5)

    # Case 3: C_in=12 with cin_tile=8 -> masked C_in tail + masked HW tail
    # exercised together.
    args3 = make_case(k3, 2, 12, 8, 15, 15)
    out3 = jax.block_until_ready(aspp_pooling(*args3, cin_tile=8))
    ref3 = _reference(*args3)
    assert out3.shape == ref3.shape
    assert jnp.allclose(out3, ref3, atol=1e-5, rtol=1e-5)

    print("KERNEL_OK")
</pallas_src>

<mosaic_0001>
module attributes {stable_mosaic.version = 11 : i64} {
  func.func @_pool_reduce_kernel(%arg0: i32, %arg1: i32, %arg2: memref<2x4x128xf32, #tpu.memory_space<vmem>>, %arg3: memref<1x4x4xf32, #tpu.memory_space<vmem>>, %arg4: memref<1x2x4xf32, #tpu.memory_space<vmem>>, %arg5: memref<2x4xf32, #tpu.memory_space<vmem>>) attributes {dimension_semantics = [#tpu.dimension_semantics<parallel>, #tpu.dimension_semantics<arbitrary>], iteration_bounds = array<i64: 1, 2>, scalar_prefetch = 0 : i64, scratch_operands = 1 : i64, tpu.core_type = #tpu.core_type<tc>, window_params = [{transform_indices = @transform_0, window_bounds = array<i64: 2, 4, 128>}, {transform_indices = @transform_1, window_bounds = array<i64: 1, 4, 4>}, {transform_indices = @transform_2, window_bounds = array<i64: 1, 2, 4>}]} {
    %c0_i32 = arith.constant 0 : i32
    %0 = arith.cmpi eq, %arg1, %c0_i32 : i32
    %1 = arith.extui %0 : i1 to i32
    %c0_i32_0 = arith.constant 0 : i32
    %2 = arith.cmpi ne, %1, %c0_i32_0 : i32
    scf.if %2 {
      %cst_8 = arith.constant 0.000000e+00 : f32
      %11 = vector.broadcast %cst_8 : f32 to vector<2x4xf32>
      %c0_9 = arith.constant 0 : index
      %c0_10 = arith.constant 0 : index
      %12 = vector.load %arg5[%c0_9, %c0_10] : memref<2x4xf32, #tpu.memory_space<vmem>>, vector<2x4xf32>
      tpu.vector_store %arg5[%c0_9, %c0_10], %11 {strides = array<i32>} : memref<2x4xf32, #tpu.memory_space<vmem>>, vector<2x4xf32>,
    } else {
    }
    %c0 = arith.constant 0 : index
    %c0_1 = arith.constant 0 : index
    %c0_2 = arith.constant 0 : index
    %3 = vector.load %arg2[%c0, %c0_1, %c0_2] : memref<2x4x128xf32, #tpu.memory_space<vmem>>, vector<2x4x128xf32>
    %c0_3 = arith.constant 0 : index
    %c0_4 = arith.constant 0 : index
    %4 = vector.load %arg5[%c0_3, %c0_4] : memref<2x4xf32, #tpu.memory_space<vmem>>, vector<2x4xf32>
    %cst = arith.constant dense<0.000000e+00> : vector<2x4xf32>
    %5 = vector.multi_reduction <add>, %3, %cst [2] : vector<2x4x128xf32> to vector<2x4xf32>
    %6 = arith.addf %4, %5 : vector<2x4xf32>
    %c0_5 = arith.constant 0 : index
    %c0_6 = arith.constant 0 : index
    %7 = vector.load %arg5[%c0_5, %c0_6] : memref<2x4xf32, #tpu.memory_space<vmem>>, vector<2x4xf32>
    tpu.vector_store %arg5[%c0_5, %c0_6], %6 {strides = array<i32>} : memref<2x4xf32, #tpu.memory_space<vmem>>, vector<2x4xf32>,
    %c1_i32 = arith.constant 1 : i32
    %8 = arith.cmpi eq, %arg1, %c1_i32 : i32
    %9 = arith.extui %8 : i1 to i32
    %c0_i32_7 = arith.constant 0 : i32
    %10 = arith.cmpi ne, %9, %c0_i32_7 : i32
    scf.if %10 {
      %c0_8 = arith.constant 0 : index
      %c0_9 = arith.constant 0 : index
      %11 = vector.load %arg5[%c0_8, %c0_9] : memref<2x4xf32, #tpu.memory_space<vmem>>, vector<2x4xf32>
      %cst_10 = arith.constant 3.906250e-03 : f32
      %12 = vector.broadcast %cst_10 : f32 to vector<2x4xf32>
      %13 = arith.mulf %11, %12 : vector<2x4xf32>
      %c0_11 = arith.constant 0 : index
      %c0_12 = arith.constant 0 : index
      %c0_13 = arith.constant 0 : index
      %14 = vector.load %arg3[%c0_11, %c0_12, %c0_13] : memref<1x4x4xf32, #tpu.memory_space<vmem>>, vector<1x4x4xf32>
      %15 = vector.shape_cast %14 : vector<1x4x4xf32> to vector<4x4xf32>
      %cst_14 = arith.constant dense<0.000000e+00> : vector<2x4xf32>
      %16 = tpu.matmul %13, %15, %cst_14 {dimension_numbers = #tpu.dot_dimension_numbers<[1], [0], [0], [1], [0, 0, 1, 1], [], []>} : vector<2x4xf32>, vector<4x4xf32>, vector<2x4xf32> -> vector<2x4xf32>
      %c0_15 = arith.constant 0 : index
      %c0_16 = arith.constant 0 : index
      %c0_17 = arith.constant 0 : index
      %17 = vector.load %arg4[%c0_15, %c0_16, %c0_17] : memref<1x2x4xf32, #tpu.memory_space<vmem>>, vector<1x2x4xf32>
      %18 = vector.shape_cast %17 : vector<1x2x4xf32> to vector<2x4xf32>
      %19 = vector.shape_cast %16 : vector<2x4xf32> to vector<1x2x4xf32>
      tpu.vector_store %arg4[%c0_15, %c0_16, %c0_17], %19 {strides = array<i32>} : memref<1x2x4xf32, #tpu.memory_space<vmem>>, vector<1x2x4xf32>,
    } else {
    }
    return
  }
  func.func @transform_0(%arg0: i32, %arg1: i32) -> (i32, i32, i32) {
    %c0_i32 = arith.constant 0 : i32
    %c0_i32_0 = arith.constant 0 : i32
    return %c0_i32, %arg0, %arg1 : i32, i32, i32
  }
  func.func @transform_1(%arg0: i32, %arg1: i32) -> (i32, i32, i32) {
    %c0_i32 = arith.constant 0 : i32
    %c0_i32_0 = arith.constant 0 : i32
    %c0_i32_1 = arith.constant 0 : i32
    return %arg0, %c0_i32, %c0_i32_0 : i32, i32, i32
  }
  func.func @transform_2(%arg0: i32, %arg1: i32) -> (i32, i32, i32) {
    %c0_i32 = arith.constant 0 : i32
    %c0_i32_0 = arith.constant 0 : i32
    %c0_i32_1 = arith.constant 0 : i32
    return %arg0, %c0_i32, %c0_i32_0 : i32, i32, i32
  }
}

</mosaic_0001>

<llo_original>
// kernel: tpu_custom_call.1
$region0: #{tpu_custom_call.1}
  #allocation0 [shape = 'u32[]', space=smem, size = 0x4, offset = 0x4, fixed_abs, tag = 'smem constant byte address 0x4 - core index']
  #allocation1 [shape = 'u32[144,128]{1,0:T(1,128)}', space=vmem, size = 0x12000, scoped, tag = 'internal scratch']
  #allocation2 [shape = 'f32[2,4]{1,0:T(2,128)}', space=vmem, size = 0x400, scoped, tag = 'scratch operand']
  %s0 = inlined_call_operand.hbm [shape: f32[2,4,256], index: 0, kind: input, shape index: {}]
  %s1 = inlined_call_operand.hbm [shape: f32[1,4,4], index: 1, kind: input, shape index: {}]
  %s2 = inlined_call_operand.hbm [shape: f32[1,2,4], index: 2, kind: output, shape index: {}]
  %s3 = sld [smem:[#allocation0]]
  $region57: #{tpu_custom_call.1} parent=0
    _
  %s5 = ssub.s32 1, %s3
  %s6 = scalar_select 0, %s5, %s3
  $region1: #{tpu_custom_call.1} parent=0
    #allocation3 [shape = 'u8[8192]{0}', space=vmem, size = 0x2000, scoped, tag = 'input window, operand 0']
    #allocation4 [shape = 's32[2]{0}', space=sflag, size = 0x8, scoped, tag = 'scoped memory for tpu_custom_call.1']
    #allocation5 [shape = 's32[2]{0}', space=sflag, size = 0x8, scoped, tag = 'scoped memory for tpu_custom_call.1']
    #allocation6 [shape = 'u8[2048]{0}', space=vmem, size = 0x800, scoped, tag = 'input window, operand 1, single buffered']
    #allocation7 [shape = 's32[1]{0}', space=sflag, size = 0x4, scoped, tag = 'scoped memory for tpu_custom_call.1']
    #allocation8 [shape = 'u8[1024]{0}', space=vmem, size = 0x400, scoped, tag = 'output window, operand 0, single buffered']
    %7 = vsyncpa [#allocation4], 0
    %s8 = scalar_lea.sflag [#allocation4], 1
    %9 = vsyncpa %s8, 0
    %10 = vsyncpa [#allocation7], 0
    %11 = vsyncpa [#allocation5], 0
    loop: start=0, step=1, limit=4
    $region2: #{tpu_custom_call.1} parent=1 // loop_pre_header
      _
    $region3: #{tpu_custom_call.1} parent=1 // loop_header
      %s13 = sphi 0, %s17
      %p14 = scmp.ge.s32.totalorder %s13, 4
      %s20 = sphi 0, %s32
      %s21 = sphi 0, %s28
      %s22 = sphi 0, %s20
      %s23 = sphi 0, %s21
      %s24 = sphi 0, %s22
      %s25 = sphi 0, %s23
      %s37 = sphi 0, %s39
      %s40 = sphi 0, %s37
      %s41 = sphi 0, %s40
      %s57 = sphi 0, %s41
      %s63 = sphi 0, %s65
      %s66 = sphi 0, %s63
      %s67 = sphi 0, %s66
      %s83 = sphi 0, %s67
      %s89 = sphi 0, %s91
      %s92 = sphi 0, %s89
      %s93 = sphi 0, %s92
      %s109 = sphi 0, %s93
    $region4: #{tpu_custom_call.1} parent=1 // loop_header_branch
      %16 = sbr.rel (%p14) target = $region8
    $region5: #{tpu_custom_call.1} parent=1 // loop_body
      %s18 = ssub.s32 %s13, 1
      %s19 = ssub.s32 %s13, 2
      %s26 = sadd.s32 1, %s21
      %p27 = scmp.ge.s32.totalorder %s26, 2
      %s28 = scalar_select %p27, 0, %s26
      %s29 = sadd.s32 1, %s20
      %s30 = scalar_select %p27, %s29, %s20
      %p31 = scmp.ge.s32.totalorder %s30, 1
      %s32 = scalar_select %p31, 0, %s30
      %s33 = ssub.s32 %s20, %s32
      %s34 = ssub.s32 %s21, %s28
      %s35 = sor.u32 %s33, %s34
      %p36 = scmp.eq.s32.totalorder %s35, 0
      %s38 = sadd.s32 %s37, 1
      %s39 = scalar_select %p36, %s37, %s38
      %p42 = pneg %p36
      %p43 = scmp.eq.s32.totalorder %s13, 1
      %p44 = por %p42, %p43
      %p45 = scmp.ne.s32.totalorder %s37, %s40
      %p46 = scmp.eq.s32.totalorder %s13, 0
      %p47 = por %p45, %p46
      %p48 = scmp.ne.s32.totalorder %s37, %s40
      %p49 = scmp.eq.s32.totalorder %s18, 1
      %p50 = por %p48, %p49
      %p51 = scmp.ne.s32.totalorder %s40, %s41
      %p52 = scmp.eq.s32.totalorder %s18, 0
      %p53 = por %p51, %p52
      %p54 = scmp.ne.s32.totalorder %s40, %s41
      %p55 = scmp.eq.s32.totalorder %s19, 1
      %p56 = por %p54, %p55
      %p58 = scmp.ne.s32.totalorder %s41, %s57
      %p59 = scmp.eq.s32.totalorder %s19, 0
      %p60 = por %p58, %p59
      %s61 = ssub.s32 %s20, %s32
      %p62 = scmp.eq.s32.totalorder %s61, 0
      %s64 = sadd.s32 %s63, 1
      %s65 = scalar_select %p62, %s63, %s64
      %p68 = pneg %p62
      %p69 = scmp.eq.s32.totalorder %s13, 1
      %p70 = por %p68, %p69
      %p71 = scmp.ne.s32.totalorder %s63, %s66
      %p72 = scmp.eq.s32.totalorder %s13, 0
      %p73 = por %p71, %p72
      %p74 = scmp.ne.s32.totalorder %s63, %s66
      %p75 = scmp.eq.s32.totalorder %s18, 1
      %p76 = por %p74, %p75
      %p77 = scmp.ne.s32.totalorder %s66, %s67
      %p78 = scmp.eq.s32.totalorder %s18, 0
      %p79 = por %p77, %p78
      %p80 = scmp.ne.s32.totalorder %s66, %s67
      %p81 = scmp.eq.s32.totalorder %s19, 1
      %p82 = por %p80, %p81
      %p84 = scmp.ne.s32.totalorder %s67, %s83
      %p85 = scmp.eq.s32.totalorder %s19, 0
      %p86 = por %p84, %p85
      %s87 = ssub.s32 %s20, %s32
      %p88 = scmp.eq.s32.totalorder %s87, 0
      %s90 = sadd.s32 %s89, 1
      %s91 = scalar_select %p88, %s89, %s90
      %p94 = pneg %p88
      %p95 = scmp.eq.s32.totalorder %s13, 1
      %p96 = por %p94, %p95
      %p97 = scmp.ne.s32.totalorder %s89, %s92
      %p98 = scmp.eq.s32.totalorder %s13, 0
      %p99 = por %p97, %p98
      %p100 = scmp.ne.s32.totalorder %s89, %s92
      %p101 = scmp.eq.s32.totalorder %s18, 1
      %p102 = por %p100, %p101
      %p103 = scmp.ne.s32.totalorder %s92, %s93
      %p104 = scmp.eq.s32.totalorder %s18, 0
      %p105 = por %p103, %p104
      %p106 = scmp.ne.s32.totalorder %s92, %s93
      %p107 = scmp.eq.s32.totalorder %s19, 1
      %p108 = por %p106, %p107
      %p110 = scmp.ne.s32.totalorder %s93, %s109
      %p111 = scmp.eq.s32.totalorder %s19, 0
      %p112 = por %p110, %p111
      %p113 = scmp.le.s32.totalorder 1, %s13
      %p114 = scmp.lt.s32.totalorder %s13, 3
      %p115 = pnand %p113, %p114
      %p116 = pneg %p115
      // Predicated region
      $region9: #{tpu_custom_call.1} parent=5 // pred_check
        _
      $region10: #{tpu_custom_call.1} parent=5 // pred_check_branch
        %118 = sbr.rel (%p115) target = $region12
      $region11: #{tpu_custom_call.1} parent=5 // pred_region
        %s119 = ssub.s32 %s13, 1
        // Predicated region
        $region13: #{tpu_custom_call.1} parent=11 // pred_check
          %p120 = pneg %p79
        $region14: #{tpu_custom_call.1} parent=11 // pred_check_branch
          %122 = sbr.rel (%p120) target = $region16
        $region15: #{tpu_custom_call.1} parent=11 // pred_region
          %s124 = ssub.s32 64, 64
          %125 = vsyncadd [#allocation7], %s124
          %s126 = smul.addr %s22, 64
          %s127 = scalar_lea.hbm %s1, %s126
          %s129 = sshll.u32 [#allocation6], 4
          %s130 = int_to_ptr.vmem [resolvable:$true] %s129
          %132 = dma.hbm_to_vmem [thread:$0]  %s127, 64, %s130, [#allocation7]
        $region16: #{tpu_custom_call.1} parent=11 // pred_fallthru
          _
      $region12: #{tpu_custom_call.1} parent=5 // pred_fallthru
        _
      %p133 = scmp.lt.s32.totalorder %s13, 2
      // Predicated region
      $region17: #{tpu_custom_call.1} parent=5 // pred_check
        %p134 = pneg %p133
      $region18: #{tpu_custom_call.1} parent=5 // pred_check_branch
        %136 = sbr.rel (%p134) target = $region20
      $region19: #{tpu_custom_call.1} parent=5 // pred_region
        // Predicated region
        $region21: #{tpu_custom_call.1} parent=19 // pred_check
          %p137 = pneg %p47
        $region22: #{tpu_custom_call.1} parent=19 // pred_check_branch
          %139 = sbr.rel (%p137) target = $region24
        $region23: #{tpu_custom_call.1} parent=19 // pred_region
          %s140 = sand.u32 %s37, 1
          %s141 = scalar_lea.sflag [#allocation4], %s140
          %s142 = sand.u32 %s37, 1
          %s143 = smul.addr %s142, 8
          %s144 = scalar_lea.vmem [#allocation3], %s143
          %s146 = ssub.s32 128, 128
          %147 = vsyncadd %s141, %s146
          %s148 = smul.addr %s20, 2
          %s149 = sadd.s32 %s21, %s148
          %s150 = smul.addr %s149, 64
          %s151 = scalar_lea.hbm %s0, %s150
          %s152 = sshll.u32 %s144, 4
          %s153 = int_to_ptr.vmem [resolvable:$true] %s152
          %158 = dma.hbm_to_vmem [thread:$0]  %s151, 128, %s153, %s141, 128, 64, 4
        $region24: #{tpu_custom_call.1} parent=19 // pred_fallthru
          _
      $region20: #{tpu_custom_call.1} parent=5 // pred_fallthru
        _
      %p159 = scmp.le.s32.totalorder 1, %s13
      %p160 = scmp.lt.s32.totalorder %s13, 3
      %p161 = pnand %p159, %p160
      %p162 = pneg %p161
      // Predicated region
      $region25: #{tpu_custom_call.1} parent=5 // pred_check
        _
      $region26: #{tpu_custom_call.1} parent=5 // pred_check_branch
        %164 = sbr.rel (%p161) target = $region28
      $region27: #{tpu_custom_call.1} parent=5 // pred_region
        %s165 = ssub.s32 %s13, 1
        %s166 = sand.u32 %s40, 1
        %s167 = scalar_lea.sflag [#allocation4], %s166
        %s168 = sand.u32 %s40, 1
        %s169 = smul.addr %s168, 8
        %s170 = scalar_lea.vmem [#allocation3], %s169
        // Predicated region
        $region29: #{tpu_custom_call.1} parent=27 // pred_check
          %p171 = pneg %p53
        $region30: #{tpu_custom_call.1} parent=27 // pred_check_branch
          %173 = sbr.rel (%p171) target = $region32
        $region31: #{tpu_custom_call.1} parent=27 // pred_region
          %174 = dma.done %s167, 128
        $region32: #{tpu_custom_call.1} parent=27 // pred_fallthru
          _
        // Predicated region
        $region33: #{tpu_custom_call.1} parent=27 // pred_check
          %p175 = pneg %p79
        $region34: #{tpu_custom_call.1} parent=27 // pred_check_branch
          %177 = sbr.rel (%p175) target = $region36
        $region35: #{tpu_custom_call.1} parent=27 // pred_region
          %178 = dma.done [#allocation7], 64
        $region36: #{tpu_custom_call.1} parent=27 // pred_fallthru
          _
        %s179 = sand.u32 %s40, 1
        %s180 = scalar_lea.sflag [#allocation4], %s179
        %s181 = sand.u32 %s40, 1
        %s182 = smul.addr %s181, 8
        %s183 = scalar_lea.vmem [#allocation3], %s182
        %p184 = pneg %p53
        %p185 = pneg %p50
        %p186 = pneg %p79
        %p187 = pneg %p76
        %p188 = pneg %p105
        %p189 = pneg %p102
        %p190 = scmp.eq.s32.totalorder %s23, 0
        // Predicated region
        $region37: #{tpu_custom_call.1} parent=27 // pred_check
          %p191 = pneg %p190
        $region38: #{tpu_custom_call.1} parent=27 // pred_check_branch
          %193 = sbr.rel (%p191) target = $region40
        $region39: #{tpu_custom_call.1} parent=27 // pred_region
          %vm194 = vcmask 25600
          %195 = vst.msk [vmem:[#allocation2] sm:$0x3] %vm194, 0.0
        $region40: #{tpu_custom_call.1} parent=27 // pred_fallthru
          _
        %v196 = vld [vmem:[%s170] sm:$0xf]
        %v197 = vld [vmem:[%s170 + $0x4] sm:$0xf]
        %v198 = vld [vmem:[#allocation2] sm:$0x3]
        %vm199 = vcmask 1043456
        %v200 = vsel %vm199, %v196, 0.0
        %201 = vadd.xlane.f32.xlu0 %v200
        %v202 = vpop.xlane.xlu0 %201
        %v203 = vsel %vm199, %v197, 0.0
        %204 = vadd.xlane.f32.xlu0 %v203
        %v205 = vpop.xlane.xlu0 %204
        %v208 = vlaneseq
        %v209 = vand.u32 %v208, 127
        %v210 = vlaneseq
        %v211 = vshrl.u32 %v210, 7
        %v212 = vsub.s32 %v209, %v211
        %v213 = vrot.slane %v202, %v212
        %v214 = vlaneseq
        %v215 = vshrl.u32 %v214, 7
        %v216 = vsub.s32 %v209, %v215
        %v217 = vrot.slane %v205, %v216
        %vm218 = vcmask 1041409
        %v219 = vsel %vm218, %v217, %v213
        %v221 = vadd.f32 %v198, %v219
        %vm222 = vcmask 25600
        %223 = vst.msk [vmem:[#allocation2] sm:$0x3] %vm222, %v221
        %p224 = scmp.eq.s32.totalorder %s23, 1
        // Predicated region
        $region41: #{tpu_custom_call.1} parent=27 // pred_check
          %p225 = pneg %p224
        $region42: #{tpu_custom_call.1} parent=27 // pred_check_branch
          %227 = sbr.rel (%p225) target = $region44
        $region43: #{tpu_custom_call.1} parent=27 // pred_region
          %v228 = vld [vmem:[#allocation2] sm:$0x3]
          %v229 = vmul.f32 %v228, 0.00390625
          %v230 = vld [vmem:[#allocation6] sm:$0xf]
          %vm231 = vcmask 31744
          %v233 = vsel %vm231, %v229, 0
          %v236 = vsel %vm199, %v230, 0
          %238 = vmatprep.subr.mxu0 0.0
          %239 = vmatpush1.msra.mxu0 0.0
          %240 = vmatprep.subr.mxu0 0.0
          %241 = vmatpush1.msra.mxu0 0.0
          %242 = vmatprep.subr.mxu0 0.0
          %243 = vmatpush1.msra.mxu0 0.0
          %244 = vmatprep.subr.mxu0 0.0
          %245 = vmatpush1.msra.mxu0 0.0
          %246 = vmatprep.subr.mxu0 0.0
          %247 = vmatpush1.msra.mxu0 0.0
          %248 = vmatprep.subr.mxu0 0.0
          %249 = vmatpush1.msra.mxu0 0.0
          %250 = vmatprep.subr.mxu0 0.0
          %251 = vmatpush1.msra.mxu0 0.0
          %252 = vmatprep.subr.mxu0 0.0
          %253 = vmatpush1.msra.mxu0 0.0
          %254 = vmatprep.subr.mxu0 0.0
          %255 = vmatpush1.msra.mxu0 0.0
          %256 = vmatprep.subr.mxu0 0.0
          %257 = vmatpush1.msra.mxu0 0.0
          %258 = vmatprep.subr.mxu0 0.0
          %259 = vmatpush1.msra.mxu0 0.0
          %260 = vmatprep.subr.mxu0 0.0
          %261 = vmatpush1.msra.mxu0 0.0
          %262 = vmatprep.subr.mxu0 0.0
          %263 = vmatpush1.msra.mxu0 0.0
          %264 = vmatprep.subr.mxu0 0.0
          %265 = vmatpush1.msra.mxu0 0.0
          %266 = vmatprep.subr.mxu0 0.0
          %267 = vmatpush1.msra.mxu0 0.0
          %268 = vmatprep.subr.mxu0 0.0
          %269 = vmatpush1.msra.mxu0 %v236
          %270 = vmatprep.subr.mxu0 0.0
          %271 = vmatpush2.msra.mxu0 0.0
          %272 = vmatprep.subr.mxu0 0.0
          %273 = vmatpush2.msra.mxu0 0.0
          %274 = vmatprep.subr.mxu0 0.0
          %275 = vmatpush2.msra.mxu0 0.0
          %276 = vmatprep.subr.mxu0 0.0
          %277 = vmatpush2.msra.mxu0 0.0
          %278 = vmatprep.subr.mxu0 0.0
          %279 = vmatpush2.msra.mxu0 0.0
          %280 = vmatprep.subr.mxu0 0.0
          %281 = vmatpush2.msra.mxu0 0.0
          %282 = vmatprep.subr.mxu0 0.0
          %283 = vmatpush2.msra.mxu0 0.0
          %284 = vmatprep.subr.mxu0 0.0
          %285 = vmatpush2.msra.mxu0 0.0
          %286 = vmatprep.subr.mxu0 0.0
          %287 = vmatpush2.msra.mxu0 0.0
          %288 = vmatprep.subr.mxu0 0.0
          %289 = vmatpush2.msra.mxu0 0.0
          %290 = vmatprep.subr.mxu0 0.0
          %291 = vmatpush2.msra.mxu0 0.0
          %292 = vmatprep.subr.mxu0 0.0
          %293 = vmatpush2.msra.mxu0 0.0
          %294 = vmatprep.subr.mxu0 0.0
          %295 = vmatpush2.msra.mxu0 0.0
          %296 = vmatprep.subr.mxu0 0.0
          %297 = vmatpush2.msra.mxu0 0.0
          %298 = vmatprep.subr.mxu0 0.0
          %299 = vmatpush2.msra.mxu0 0.0
          %300 = vmatprep.subr.mxu0 0.0
          %301 = vmatpush2.msra.mxu0 0.0
          %302 = vmatprep.mubr.f32.mxu0 0.0
          %303 = vmatmul.mubr.f32.gmra.mxu0 %v233
          %v304 = vpop.f32.mrf.mxu0
          %v305 = vadd.f32 0.0, %v304
          %v306 = vpop.f32.mrf.mxu0
          %307 = vdwg.mxu0
          %308 = vst.msk [vmem:[#allocation8] sm:$0x3] %vm222, %v305
        $region44: #{tpu_custom_call.1} parent=27 // pred_fallthru
          _
        // Predicated region
        $region45: #{tpu_custom_call.1} parent=27 // pred_check
          %p309 = pneg %p102
        $region46: #{tpu_custom_call.1} parent=27 // pred_check_branch
          %311 = sbr.rel (%p309) target = $region48
        $region47: #{tpu_custom_call.1} parent=27 // pred_region
          %s313 = ssub.s32 32, 32
          %314 = vsyncadd [#allocation5], %s313
          %s315 = smul.addr %s22, 32
          %s316 = scalar_lea.hbm %s2, %s315
          %s318 = sshll.u32 [#allocation8], 4
          %s319 = int_to_ptr.vmem [resolvable:$true] %s318
          %321 = dma.vmem_to_hbm [thread:$0]  %s319, 32, %s316, [#allocation5]
        $region48: #{tpu_custom_call.1} parent=27 // pred_fallthru
          _
        // Predicated region
        $region49: #{tpu_custom_call.1} parent=27 // pred_check
          %p322 = pneg %p102
        $region50: #{tpu_custom_call.1} parent=27 // pred_check_branch
          %324 = sbr.rel (%p322) target = $region52
        $region51: #{tpu_custom_call.1} parent=27 // pred_region
          %325 = dma.done [#allocation5], 32
        $region52: #{tpu_custom_call.1} parent=27 // pred_fallthru
          _
      $region28: #{tpu_custom_call.1} parent=5 // pred_fallthru
        _
      %p326 = scmp.le.s32.totalorder 2, %s13
      // Predicated region
      $region53: #{tpu_custom_call.1} parent=5 // pred_check
        %p327 = pneg %p326
      $region54: #{tpu_custom_call.1} parent=5 // pred_check_branch
        %329 = sbr.rel (%p327) target = $region56
      $region55: #{tpu_custom_call.1} parent=5 // pred_region
        %s330 = ssub.s32 %s13, 2
      $region56: #{tpu_custom_call.1} parent=5 // pred_fallthru
        _
    $region6: #{tpu_custom_call.1} parent=1 // loop_footer
      %s17 = sadd.s32 1, %s13
    $region7: #{tpu_custom_call.1} parent=1 // loop_footer_branch
      %12 = sbr.rel target = $region3
    $region8: #{tpu_custom_call.1} parent=1 // loop_exit
      _
    %331 = vsyncpa [#allocation4], 1
    %s332 = scalar_lea.sflag [#allocation4], 1
    %333 = vsyncpa %s332, 1
    %334 = vsyncpa [#allocation7], 1
    %335 = vsyncpa [#allocation5], 1
    %s336 = scalar_lea.sflag [#allocation5], 1
    %337 = vsyncpa %s336, 1

</llo_original>
